<compile_context>
chip_gen: v7x
topology: tpu7x:2x2x1
jax: 0.10.0
libtpu: 0.0.40
codegen_flags: <defaults>
</compile_context>

<pallas_src>
import functools

import jax
import jax.numpy as jnp
from jax.experimental import pallas as pl
from jax.experimental.pallas import tpu as pltpu

# ------------------------------ small shapes ----------------------------------
B = 2      # batch
S = 8      # sequence length
D = 32     # d_model
EPS = 1e-5


# ------------------------------ helpers ----------------------------------------
def _pick_tile(n, cap=512):
    """Largest power-of-two row tile <= cap that divides n; else the full extent."""
    t = cap
    while t >= 8:
        if n % t == 0:
            return t
        t //= 2
    return n


def _project(e, w_ref, p_ref, d_model, fused):
    """Conditioning rows -> (scale, shift) in f32. MXU operands keep native dtype."""
    if fused:
        # One (D, 2D) RHS push; the column split at D is 128-lane aligned (free).
        proj = jnp.dot(e, w_ref[...], preferred_element_type=jnp.float32)
        return proj[:, :d_model] + p_ref[0:1, :], proj[:, d_model:] + p_ref[1:2, :]
    w = jnp.dot(e, w_ref[0], preferred_element_type=jnp.float32) + p_ref[0:1, :]
    b = jnp.dot(e, w_ref[1], preferred_element_type=jnp.float32) + p_ref[1:2, :]
    return w, b


def _ln_combine(x_ref, o_ref, p_ref, w, b, eps):
    """LayerNorm(x) * w + b with independent E[x]/E[x^2] reductions."""
    x = x_ref[...].astype(jnp.float32)
    s1 = jnp.mean(x, axis=-1, keepdims=True)        # E[x]
    s2 = jnp.mean(x * x, axis=-1, keepdims=True)    # E[x^2]   (co-issuable reduction)
    xn = (x - s1) * jax.lax.rsqrt(s2 - s1 * s1 + eps)
    xn = xn * p_ref[2:3, :] + p_ref[3:4, :]         # LN elementwise affine
    o_ref[...] = (w * xn + b).astype(o_ref.dtype)


# --------------------------------- kernels -------------------------------------
def adaln_token_kernel(x_ref, emb_ref, w_ref, p_ref, o_ref, *, eps, d_model, fused):
    """Per-token conditioning: x_ref/emb_ref are (row_tile, D) tiles."""
    w, b = _project(emb_ref[...], w_ref, p_ref, d_model, fused)
    _ln_combine(x_ref, o_ref, p_ref, w, b, eps)


def adaln_bcast_kernel(x_ref, emb_ref, w_ref, p_ref, o_ref, *, eps, d_model, fused):
    """Per-batch conditioning: emb_ref is the full (B, D) table (VMEM resident),
    x_ref is a (seq_tile, D) tile of batch row pl.program_id(0)."""
    b_idx = pl.program_id(0)
    e = emb_ref[pl.ds(b_idx, 1), :]                      # (1, D) conditioning row
    w, b = _project(e, w_ref, p_ref, d_model, fused)     # (1, D) -> broadcast over rows
    _ln_combine(x_ref, o_ref, p_ref, w, b, eps)


# -------------------------------- param packing --------------------------------
def make_params(proj_weight, proj_bias, ln_gamma, ln_beta):
    """PyTorch layout -> kernel layout.

    proj_weight: (2D, D) nn.Linear.weight ; proj_bias: (2D,)
    ln_gamma, ln_beta: (D,)
    """
    d = ln_gamma.shape[-1]
    fused = (d % 128 == 0)
    if fused:
        wp = jnp.asarray(proj_weight).T                              # (D, 2D): [scale|shift]
    else:
        wp = jnp.stack([jnp.asarray(proj_weight[:d, :]).T,           # (2, D, D) pre-split
                        jnp.asarray(proj_weight[d:, :]).T], axis=0)
    packed = jnp.stack(
        [proj_bias[:d], proj_bias[d:], ln_gamma, ln_beta], axis=0
    ).astype(jnp.float32)                                            # (4, D)
    return dict(wp=wp, packed=packed, fused=fused, d_model=d)


# -------------------------------- call paths ------------------------------------
def _vmem_limit(tile_bytes, weight_bytes):
    # generous headroom for double-buffering, safe on v5e/v6e/v7x
    return int(min(max(4 * tile_bytes + 2 * weight_bytes, 8 << 20), 64 << 20))


def _call_per_token(x, emb, params):
    """emb has one conditioning vector per token (same shape as x)."""
    d = params["d_model"]
    wp, packed, fused = params["wp"], params["packed"], params["fused"]
    x2 = x.reshape(-1, d)
    e2 = emb.reshape(-1, d)
    n = x2.shape[0]
    tr = _pick_tile(n)
    grid = (n // tr,)

    iz, ez = x.dtype.itemsize, emb.dtype.itemsize
    weight_bytes = wp.size * wp.dtype.itemsize + packed.size * 4
    tile_bytes = tr * d * (2 * iz + ez)
    cost = pl.CostEstimate(
        flops=int(2 * n * d * 2 * d + 10 * n * d),
        bytes_accessed=int(n * d * (2 * iz + ez) + weight_bytes),
        transcendentals=int(n),
    )

    out = pl.pallas_call(
        functools.partial(adaln_token_kernel, eps=EPS, d_model=d, fused=fused),
        out_shape=jax.ShapeDtypeStruct(x2.shape, x.dtype),
        grid=grid,
        in_specs=[
            pl.BlockSpec((tr, d), lambda i: (i, 0)),
            pl.BlockSpec((tr, d), lambda i: (i, 0)),
            pl.BlockSpec(wp.shape, lambda i: (0,) * wp.ndim),      # resident, DMA'd once
            pl.BlockSpec(packed.shape, lambda i: (0, 0)),          # resident, DMA'd once
        ],
        out_specs=pl.BlockSpec((tr, d), lambda i: (i, 0)),
        compiler_params=pltpu.CompilerParams(
            dimension_semantics=("parallel",),
            vmem_limit_bytes=_vmem_limit(tile_bytes, weight_bytes)),
        cost_estimate=cost,
    )(x2, e2, wp, packed)
    return out.reshape(x.shape)


def _call_broadcast(x, emb_bd, params):
    """x: (B, S, D); emb_bd: (B, D). No HBM broadcast; projection done in-kernel."""
    bsz, s, d = x.shape
    wp, packed, fused = params["wp"], params["packed"], params["fused"]
    ts = _pick_tile(s)
    grid = (bsz, s // ts)

    iz, ez = x.dtype.itemsize, emb_bd.dtype.itemsize
    weight_bytes = wp.size * wp.dtype.itemsize + packed.size * 4 + bsz * d * ez
    tile_bytes = ts * d * 2 * iz
    cost = pl.CostEstimate(
        flops=int(2 * bsz * (s // ts) * d * 2 * d + 10 * bsz * s * d),
        bytes_accessed=int(bsz * s * d * 2 * iz + weight_bytes),
        transcendentals=int(bsz * s),
    )

    return pl.pallas_call(
        functools.partial(adaln_bcast_kernel, eps=EPS, d_model=d, fused=fused),
        out_shape=jax.ShapeDtypeStruct(x.shape, x.dtype),
        grid=grid,
        in_specs=[
            pl.BlockSpec((pl.Squeezed(), ts, d), lambda b, si: (b, si, 0)),
            pl.BlockSpec((bsz, d), lambda b, si: (0, 0)),          # resident emb table
            pl.BlockSpec(wp.shape, lambda b, si: (0,) * wp.ndim),  # resident weights
            pl.BlockSpec(packed.shape, lambda b, si: (0, 0)),      # resident params
        ],
        out_specs=pl.BlockSpec((pl.Squeezed(), ts, d), lambda b, si: (b, si, 0)),
        compiler_params=pltpu.CompilerParams(
            dimension_semantics=("parallel", "parallel"),
            vmem_limit_bytes=_vmem_limit(tile_bytes, weight_bytes)),
        cost_estimate=cost,
    )(x, emb_bd, wp, packed)


def _adaln_call(x, emb, params):
    d = params["d_model"]
    if emb.shape == x.shape:
        return _call_per_token(x, emb, params)
    if x.ndim == 3:
        bsz = x.shape[0]
        e2 = emb.reshape(-1, d)
        if e2.shape[0] in (1, bsz):
            # Low-rank conditioning: keep it un-broadcast (B, D).
            return _call_broadcast(x, jnp.broadcast_to(e2, (bsz, d)), params)
    # General fallback: materialize the broadcast and project per token.
    return _call_per_token(x, jnp.broadcast_to(emb, x.shape), params)


def adaptive_layer_norm(inp, embedding=None, *, params):
    """Matches AdaptiveLayerNorm.forward: tuple input -> tuple output."""
    if isinstance(inp, tuple):
        x, embedding = inp
        return _adaln_call(x, embedding, params), embedding
    return _adaln_call(inp, embedding, params)


# --------------------------- pure-JAX reference ---------------------------------
def ref_adaln(x, emb, proj_weight, proj_bias, ln_gamma, ln_beta, eps=EPS):
    d = ln_gamma.shape[-1]
    proj = emb @ proj_weight.T + proj_bias
    w, b = proj[..., :d], proj[..., d:]
    mu = jnp.mean(x, axis=-1, keepdims=True)
    var = jnp.mean((x - mu) ** 2, axis=-1, keepdims=True)
    xn = (x - mu) / jnp.sqrt(var + eps) * ln_gamma + ln_beta
    return w * xn + b


# ----------------------------------- main ----------------------------------------
if __name__ == "__main__":
    key = jax.random.PRNGKey(0)
    k1, k2, k3, k4, k5, k6, k7 = jax.random.split(key, 7)

    x = jax.random.normal(k1, (B, S, D), jnp.float32)
    emb = jax.random.normal(k2, (B, S, D), jnp.float32)

    # PyTorch-layout parameters (nn.Linear(d_model, 2*d_model) + nn.LayerNorm(d_model))
    proj_weight = 0.05 * jax.random.normal(k3, (2 * D, D), jnp.float32)
    proj_bias = 0.05 * jax.random.normal(k4, (2 * D,), jnp.float32)
    ln_gamma = 1.0 + 0.05 * jax.random.normal(k5, (D,), jnp.float32)
    ln_beta = 0.05 * jax.random.normal(k6, (D,), jnp.float32)

    params = make_params(proj_weight, proj_bias, ln_gamma, ln_beta)

    # 1) per-token embedding (emb.shape == x.shape)
    out = jax.block_until_ready(adaptive_layer_norm(x, emb, params=params))
    ref = ref_adaln(x, emb, proj_weight, proj_bias, ln_gamma, ln_beta)
    assert out.shape == (B, S, D)
    assert jnp.allclose(out, ref, atol=1e-4, rtol=1e-4), float(jnp.max(jnp.abs(out - ref)))

    # 2) tuple path: forward((input, embedding)) -> (output, embedding)
    out_t, emb_t = adaptive_layer_norm((x, emb), params=params)
    out_t = jax.block_until_ready(out_t)
    assert jnp.allclose(out_t, ref, atol=1e-4, rtol=1e-4)
    assert jnp.array_equal(emb_t, emb)

    # 3) low-rank conditioning embedding (B, 1, D): per-batch projection in-kernel,
    #    no (B, S, D) broadcast materialized in HBM.
    emb_b = jax.random.normal(k7, (B, 1, D), jnp.float32)
    out_b = jax.block_until_ready(adaptive_layer_norm(x, emb_b, params=params))
    ref_b = ref_adaln(x, emb_b, proj_weight, proj_bias, ln_gamma, ln_beta)
    assert jnp.allclose(out_b, ref_b, atol=1e-4, rtol=1e-4), float(jnp.max(jnp.abs(out_b - ref_b)))

    print("KERNEL_OK")
</pallas_src>

<mosaic_0001>
module attributes {stable_mosaic.version = 11 : i64} {
  func.func @adaln_token_kernel(%arg0: i32, %arg1: memref<16x32xf32, #tpu.memory_space<vmem>>, %arg2: memref<16x32xf32, #tpu.memory_space<vmem>>, %arg3: memref<2x32x32xf32, #tpu.memory_space<vmem>>, %arg4: memref<4x32xf32, #tpu.memory_space<vmem>>, %arg5: memref<16x32xf32, #tpu.memory_space<vmem>>) attributes {dimension_semantics = [#tpu.dimension_semantics<parallel>], iteration_bounds = array<i64: 1>, scalar_prefetch = 0 : i64, scratch_operands = 0 : i64, tpu.core_type = #tpu.core_type<tc>, window_params = [{transform_indices = @transform_0, window_bounds = array<i64: 16, 32>}, {transform_indices = @transform_1, window_bounds = array<i64: 16, 32>}, {pipeline_mode = #tpu.pipeline_mode<synchronous>, transform_indices = @transform_2, window_bounds = array<i64: 2, 32, 32>}, {pipeline_mode = #tpu.pipeline_mode<synchronous>, transform_indices = @transform_3, window_bounds = array<i64: 4, 32>}, {transform_indices = @transform_4, window_bounds = array<i64: 16, 32>}]} {
    %c0 = arith.constant 0 : index
    %c0_0 = arith.constant 0 : index
    %0 = vector.load %arg2[%c0, %c0_0] : memref<16x32xf32, #tpu.memory_space<vmem>>, vector<16x32xf32>
    %c0_1 = arith.constant 0 : index
    %c0_2 = arith.constant 0 : index
    %c0_3 = arith.constant 0 : index
    %1 = vector.load %arg3[%c0_1, %c0_2, %c0_3] : memref<2x32x32xf32, #tpu.memory_space<vmem>>, vector<1x32x32xf32>
    %2 = vector.shape_cast %1 : vector<1x32x32xf32> to vector<32x32xf32>
    %cst = arith.constant dense<0.000000e+00> : vector<16x32xf32>
    %3 = tpu.matmul %0, %2, %cst {dimension_numbers = #tpu.dot_dimension_numbers<[1], [0], [0], [1], [0, 0, 1, 1], [], []>} : vector<16x32xf32>, vector<32x32xf32>, vector<16x32xf32> -> vector<16x32xf32>
    %c0_4 = arith.constant 0 : index
    %c0_5 = arith.constant 0 : index
    %4 = vector.load %arg4[%c0_4, %c0_5] : memref<4x32xf32, #tpu.memory_space<vmem>>, vector<1x32xf32>
    %5 = vector.broadcast %4 : vector<1x32xf32> to vector<16x32xf32>
    %6 = arith.addf %3, %5 : vector<16x32xf32>
    %c1 = arith.constant 1 : index
    %c0_6 = arith.constant 0 : index
    %c0_7 = arith.constant 0 : index
    %7 = vector.load %arg3[%c1, %c0_6, %c0_7] : memref<2x32x32xf32, #tpu.memory_space<vmem>>, vector<1x32x32xf32>
    %8 = vector.shape_cast %7 : vector<1x32x32xf32> to vector<32x32xf32>
    %cst_8 = arith.constant dense<0.000000e+00> : vector<16x32xf32>
    %9 = tpu.matmul %0, %8, %cst_8 {dimension_numbers = #tpu.dot_dimension_numbers<[1], [0], [0], [1], [0, 0, 1, 1], [], []>} : vector<16x32xf32>, vector<32x32xf32>, vector<16x32xf32> -> vector<16x32xf32>
    %c1_9 = arith.constant 1 : index
    %c0_10 = arith.constant 0 : index
    %10 = vector.load %arg4[%c1_9, %c0_10] : memref<4x32xf32, #tpu.memory_space<vmem>>, vector<1x32xf32>
    %11 = vector.broadcast %10 : vector<1x32xf32> to vector<16x32xf32>
    %12 = arith.addf %9, %11 : vector<16x32xf32>
    %c0_11 = arith.constant 0 : index
    %c0_12 = arith.constant 0 : index
    %13 = vector.load %arg1[%c0_11, %c0_12] : memref<16x32xf32, #tpu.memory_space<vmem>>, vector<16x32xf32>
    %cst_13 = arith.constant dense<0.000000e+00> : vector<16xf32>
    %14 = vector.multi_reduction <add>, %13, %cst_13 [1] : vector<16x32xf32> to vector<16xf32>
    %15 = vector.shape_cast %14 : vector<16xf32> to vector<16x1xf32>
    %cst_14 = arith.constant 3.200000e+01 : f32
    %16 = vector.broadcast %cst_14 : f32 to vector<16x1xf32>
    %17 = arith.divf %15, %16 : vector<16x1xf32>
    %18 = arith.mulf %13, %13 : vector<16x32xf32>
    %cst_15 = arith.constant dense<0.000000e+00> : vector<16xf32>
    %19 = vector.multi_reduction <add>, %18, %cst_15 [1] : vector<16x32xf32> to vector<16xf32>
    %20 = vector.shape_cast %19 : vector<16xf32> to vector<16x1xf32>
    %cst_16 = arith.constant 3.200000e+01 : f32
    %21 = vector.broadcast %cst_16 : f32 to vector<16x1xf32>
    %22 = arith.divf %20, %21 : vector<16x1xf32>
    %23 = vector.broadcast %17 : vector<16x1xf32> to vector<16x32xf32>
    %24 = arith.subf %13, %23 : vector<16x32xf32>
    %25 = arith.mulf %17, %17 : vector<16x1xf32>
    %26 = arith.subf %22, %25 : vector<16x1xf32>
    %cst_17 = arith.constant 9.99999974E-6 : f32
    %27 = vector.broadcast %cst_17 : f32 to vector<16x1xf32>
    %28 = arith.addf %26, %27 : vector<16x1xf32>
    %29 = math.rsqrt %28 : vector<16x1xf32>
    %30 = vector.broadcast %29 : vector<16x1xf32> to vector<16x32xf32>
    %31 = arith.mulf %24, %30 : vector<16x32xf32>
    %c2 = arith.constant 2 : index
    %c0_18 = arith.constant 0 : index
    %32 = vector.load %arg4[%c2, %c0_18] : memref<4x32xf32, #tpu.memory_space<vmem>>, vector<1x32xf32>
    %33 = vector.broadcast %32 : vector<1x32xf32> to vector<16x32xf32>
    %34 = arith.mulf %31, %33 : vector<16x32xf32>
    %c3 = arith.constant 3 : index
    %c0_19 = arith.constant 0 : index
    %35 = vector.load %arg4[%c3, %c0_19] : memref<4x32xf32, #tpu.memory_space<vmem>>, vector<1x32xf32>
    %36 = vector.broadcast %35 : vector<1x32xf32> to vector<16x32xf32>
    %37 = arith.addf %34, %36 : vector<16x32xf32>
    %38 = arith.mulf %6, %37 : vector<16x32xf32>
    %39 = arith.addf %38, %12 : vector<16x32xf32>
    %c0_20 = arith.constant 0 : index
    %c0_21 = arith.constant 0 : index
    %40 = vector.load %arg5[%c0_20, %c0_21] : memref<16x32xf32, #tpu.memory_space<vmem>>, vector<16x32xf32>
    tpu.vector_store %arg5[%c0_20, %c0_21], %39 {strides = array<i32>} : memref<16x32xf32, #tpu.memory_space<vmem>>, vector<16x32xf32>,
    return
  }
  func.func @transform_0(%arg0: i32) -> (i32, i32) {
    %c0_i32 = arith.constant 0 : i32
    %c0_i32_0 = arith.constant 0 : i32
    return %arg0, %c0_i32 : i32, i32
  }
  func.func @transform_1(%arg0: i32) -> (i32, i32) {
    %c0_i32 = arith.constant 0 : i32
    %c0_i32_0 = arith.constant 0 : i32
    return %arg0, %c0_i32 : i32, i32
  }
  func.func @transform_2(%arg0: i32) -> (i32, i32, i32) {
    %c0_i32 = arith.constant 0 : i32
    %c0_i32_0 = arith.constant 0 : i32
    %c0_i32_1 = arith.constant 0 : i32
    %c0_i32_2 = arith.constant 0 : i32
    return %c0_i32, %c0_i32_0, %c0_i32_1 : i32, i32, i32
  }
  func.func @transform_3(%arg0: i32) -> (i32, i32) {
    %c0_i32 = arith.constant 0 : i32
    %c0_i32_0 = arith.constant 0 : i32
    %c0_i32_1 = arith.constant 0 : i32
    return %c0_i32, %c0_i32_0 : i32, i32
  }
  func.func @transform_4(%arg0: i32) -> (i32, i32) {
    %c0_i32 = arith.constant 0 : i32
    %c0_i32_0 = arith.constant 0 : i32
    return %arg0, %c0_i32 : i32, i32
  }
}

</mosaic_0001>

<llo_original>
// kernel: tpu_custom_call.1
$region0: #{tpu_custom_call.1}
  #allocation0 [shape = 'u32[]', space=smem, size = 0x4, offset = 0x4, fixed_abs, tag = 'smem constant byte address 0x4 - core index']
  #allocation1 [shape = 'u32[144,128]{1,0:T(1,128)}', space=vmem, size = 0x12000, scoped, tag = 'internal scratch']
  %s0 = inlined_call_operand.hbm [shape: f32[16,32], index: 0, kind: input, shape index: {}]
  %s1 = inlined_call_operand.hbm [shape: f32[16,32], index: 1, kind: input, shape index: {}]
  %s2 = inlined_call_operand.hbm [shape: f32[2,32,32], index: 2, kind: input, shape index: {}]
  %s3 = inlined_call_operand.vmem [shape: f32[4,32], index: 3, kind: input, shape index: {}]
  %s4 = inlined_call_operand.hbm [shape: f32[16,32], index: 4, kind: output, shape index: {}]
  %s5 = sld [smem:[#allocation0]]
  $region38: #{tpu_custom_call.1} parent=0
    _
  %s7 = ssub.s32 1, %s5
  %s8 = scalar_select 0, %s7, %s5
  $region1: #{tpu_custom_call.1} parent=0
    #allocation2 [shape = 'u8[8192]{0}', space=vmem, size = 0x2000, scoped, tag = 'input window, operand 0, single buffered']
    #allocation3 [shape = 's32[1]{0}', space=sflag, size = 0x4, scoped, tag = 'scoped memory for tpu_custom_call.1']
    #allocation4 [shape = 's32[1]{0}', space=sflag, size = 0x4, scoped, tag = 'scoped memory for tpu_custom_call.1']
    #allocation5 [shape = 'u8[8192]{0}', space=vmem, size = 0x2000, scoped, tag = 'input window, operand 1, single buffered']
    #allocation6 [shape = 's32[1]{0}', space=sflag, size = 0x4, scoped, tag = 'scoped memory for tpu_custom_call.1']
    #allocation7 [shape = 'u8[32768]{0}', space=vmem, size = 0x8000, scoped, tag = 'input window, operand 2, single buffered']
    #allocation8 [shape = 'u8[8192]{0}', space=vmem, size = 0x2000, scoped, tag = 'output window, operand 0, single buffered']
    %9 = vsyncpa [#allocation3], 0
    %10 = vsyncpa [#allocation6], 0
    %11 = vsyncpa [#allocation4], 0
    // Predicated region
    $region2: #{tpu_custom_call.1} parent=1 // pred_check
      _
    $region3: #{tpu_custom_call.1} parent=1 // pred_check_branch
      %13 = sbr.rel (0) target = $region5
    $region4: #{tpu_custom_call.1} parent=1 // pred_region
      %s15 = ssub.s32 256, 256
      %16 = vsyncadd [#allocation3], %s15
      %s17 = sshll.u32 [#allocation2], 4
      %s18 = int_to_ptr.vmem [resolvable:$true] %s17
      %23 = dma.hbm_to_vmem [thread:$0]  %s0, 256, %s18, [#allocation3], 128, 128, 8
    $region5: #{tpu_custom_call.1} parent=1 // pred_fallthru
      _
    // Predicated region
    $region6: #{tpu_custom_call.1} parent=1 // pred_check
      _
    $region7: #{tpu_custom_call.1} parent=1 // pred_check_branch
      %25 = sbr.rel (0) target = $region9
    $region8: #{tpu_custom_call.1} parent=1 // pred_region
      %s27 = ssub.s32 256, 256
      %28 = vsyncadd [#allocation6], %s27
      %s29 = sshll.u32 [#allocation5], 4
      %s30 = int_to_ptr.vmem [resolvable:$true] %s29
      %35 = dma.hbm_to_vmem [thread:$0]  %s1, 256, %s30, [#allocation6], 128, 128, 8
    $region9: #{tpu_custom_call.1} parent=1 // pred_fallthru
      _
    // Predicated region
    $region10: #{tpu_custom_call.1} parent=1 // pred_check
      _
    $region11: #{tpu_custom_call.1} parent=1 // pred_check_branch
      %37 = sbr.rel (0) target = $region13
    $region12: #{tpu_custom_call.1} parent=1 // pred_region
      %s39 = ssub.s32 1024, 1024
      %40 = vsyncadd [#allocation6], %s39
      %s41 = sshll.u32 [#allocation7], 4
      %s42 = int_to_ptr.vmem [resolvable:$true] %s41
      %47 = dma.hbm_to_vmem [thread:$0]  %s2, 1024, %s42, [#allocation6], 128, 128, 8
    $region13: #{tpu_custom_call.1} parent=1 // pred_fallthru
      _
    // Predicated region
    $region14: #{tpu_custom_call.1} parent=1 // pred_check
      _
    $region15: #{tpu_custom_call.1} parent=1 // pred_check_branch
      %49 = sbr.rel (0) target = $region17
    $region16: #{tpu_custom_call.1} parent=1 // pred_region
      _
    $region17: #{tpu_custom_call.1} parent=1 // pred_fallthru
      _
    // Predicated region
    $region18: #{tpu_custom_call.1} parent=1 // pred_check
      _
    $region19: #{tpu_custom_call.1} parent=1 // pred_check_branch
      %51 = sbr.rel (0) target = $region21
    $region20: #{tpu_custom_call.1} parent=1 // pred_region
      %52 = dma.done [#allocation3], 256
    $region21: #{tpu_custom_call.1} parent=1 // pred_fallthru
      _
    // Predicated region
    $region22: #{tpu_custom_call.1} parent=1 // pred_check
      _
    $region23: #{tpu_custom_call.1} parent=1 // pred_check_branch
      %54 = sbr.rel (0) target = $region25
    $region24: #{tpu_custom_call.1} parent=1 // pred_region
      %55 = dma.done [#allocation6], 256
    $region25: #{tpu_custom_call.1} parent=1 // pred_fallthru
      _
    // Predicated region
    $region26: #{tpu_custom_call.1} parent=1 // pred_check
      _
    $region27: #{tpu_custom_call.1} parent=1 // pred_check_branch
      %57 = sbr.rel (0) target = $region29
    $region28: #{tpu_custom_call.1} parent=1 // pred_region
      %58 = dma.done [#allocation6], 1024
    $region29: #{tpu_custom_call.1} parent=1 // pred_fallthru
      _
    %v59 = vld [vmem:[#allocation5] sm:$0xff]
    %v60 = vld [vmem:[#allocation5 + $0x8] sm:$0xff]
    %v61 = vld [vmem:[#allocation7] sm:$0xff]
    %v62 = vld [vmem:[#allocation7 + $0x8] sm:$0xff]
    %v63 = vld [vmem:[#allocation7 + $0x10] sm:$0xff]
    %v64 = vld [vmem:[#allocation7 + $0x18] sm:$0xff]
    %v65 = vld [vmem:[%s3] sm:$0x1]
    %v66 = vlaneseq
    %v67 = vshrl.u32 %v66, 7
    %v68 = vsub.s32 0, %v67
    %v69 = vrot.slane %v65, %v68
    %vm70 = vcmask 261120
    %v72 = vsel %vm70, %v59, 0
    %v75 = vsel %vm70, %v60, 0
    %77 = vmatprep.subr.mxu0 0.0
    %78 = vmatpush1.msra.mxu0 %v61
    %79 = vmatprep.subr.mxu0 0.0
    %80 = vmatpush1.msra.mxu0 %v62
    %81 = vmatprep.subr.mxu0 0.0
    %82 = vmatpush1.msra.mxu0 %v63
    %83 = vmatprep.subr.mxu0 0.0
    %84 = vmatpush1.msra.mxu0 %v64
    %85 = vmatprep.subr.mxu0 0.0
    %86 = vmatpush1.msra.mxu0 0.0
    %87 = vmatprep.subr.mxu0 0.0
    %88 = vmatpush1.msra.mxu0 0.0
    %89 = vmatprep.subr.mxu0 0.0
    %90 = vmatpush1.msra.mxu0 0.0
    %91 = vmatprep.subr.mxu0 0.0
    %92 = vmatpush1.msra.mxu0 0.0
    %93 = vmatprep.subr.mxu0 0.0
    %94 = vmatpush1.msra.mxu0 0.0
    %95 = vmatprep.subr.mxu0 0.0
    %96 = vmatpush1.msra.mxu0 0.0
    %97 = vmatprep.subr.mxu0 0.0
    %98 = vmatpush1.msra.mxu0 0.0
    %99 = vmatprep.subr.mxu0 0.0
    %100 = vmatpush1.msra.mxu0 0.0
    %101 = vmatprep.subr.mxu0 0.0
    %102 = vmatpush1.msra.mxu0 0.0
    %103 = vmatprep.subr.mxu0 0.0
    %104 = vmatpush1.msra.mxu0 0.0
    %105 = vmatprep.subr.mxu0 0.0
    %106 = vmatpush1.msra.mxu0 0.0
    %107 = vmatprep.subr.mxu0 0.0
    %108 = vmatpush1.msra.mxu0 0.0
    %109 = vmatprep.subr.mxu0 0.0
    %110 = vmatpush1.msra.mxu0 0.0
    %111 = vmatprep.subr.mxu0 0.0
    %112 = vmatpush1.msra.mxu0 0.0
    %113 = vmatprep.subr.mxu0 0.0
    %114 = vmatpush1.msra.mxu0 0.0
    %115 = vmatprep.subr.mxu0 0.0
    %116 = vmatpush1.msra.mxu0 0.0
    %117 = vmatprep.subr.mxu0 0.0
    %118 = vmatpush1.msra.mxu0 0.0
    %119 = vmatprep.subr.mxu0 0.0
    %120 = vmatpush1.msra.mxu0 0.0
    %121 = vmatprep.subr.mxu0 0.0
    %122 = vmatpush1.msra.mxu0 0.0
    %123 = vmatprep.subr.mxu0 0.0
    %124 = vmatpush1.msra.mxu0 0.0
    %125 = vmatprep.subr.mxu0 0.0
    %126 = vmatpush1.msra.mxu0 0.0
    %127 = vmatprep.subr.mxu0 0.0
    %128 = vmatpush1.msra.mxu0 0.0
    %129 = vmatprep.subr.mxu0 0.0
    %130 = vmatpush1.msra.mxu0 0.0
    %131 = vmatprep.subr.mxu0 0.0
    %132 = vmatpush1.msra.mxu0 0.0
    %133 = vmatprep.subr.mxu0 0.0
    %134 = vmatpush1.msra.mxu0 0.0
    %135 = vmatprep.subr.mxu0 0.0
    %136 = vmatpush1.msra.mxu0 0.0
    %137 = vmatprep.subr.mxu0 0.0
    %138 = vmatpush1.msra.mxu0 0.0
    %139 = vmatprep.subr.mxu0 0.0
    %140 = vmatpush1.msra.mxu0 0.0
    %141 = vmatprep.mubr.f32.mxu0 0.0
    %142 = vmatmul.mubr.f32.gmra.mrb[0].mxu0 %v72
    %v143 = vpop.f32.mrb[0].mxu0
    %v144 = vadd.f32 %v69, %v143
    %v145 = vpop.f32.mrb[0].mxu0
    %146 = vmatprep.mubr.f32.mxu0 0.0
    %147 = vmatmul.mubr.f32.gmra.mrb[0].mxu0 %v75
    %v148 = vpop.f32.mrb[0].mxu0
    %v149 = vadd.f32 %v69, %v148
    %v150 = vpop.f32.mrb[0].mxu0
    %151 = vdwg.mxu0
    %s152 = scalar_lea.vmem [#allocation7], 32
    %v153 = vld [vmem:[%s152] sm:$0xff]
    %v154 = vld [vmem:[%s152 + $0x8] sm:$0xff]
    %v155 = vld [vmem:[%s152 + $0x10] sm:$0xff]
    %v156 = vld [vmem:[%s152 + $0x18] sm:$0xff]
    %v157 = vld [vmem:[%s3 + $0x1] sm:$0x1]
    %v158 = vlaneseq
    %v159 = vshrl.u32 %v158, 7
    %v160 = vsub.s32 0, %v159
    %v161 = vrot.slane %v157, %v160
    %162 = vmatprep.subr.mxu0 0.0
    %163 = vmatpush1.msra.mxu0 %v153
    %164 = vmatprep.subr.mxu0 0.0
    %165 = vmatpush1.msra.mxu0 %v154
    %166 = vmatprep.subr.mxu0 0.0
    %167 = vmatpush1.msra.mxu0 %v155
    %168 = vmatprep.subr.mxu0 0.0
    %169 = vmatpush1.msra.mxu0 %v156
    %170 = vmatprep.subr.mxu0 0.0
    %171 = vmatpush1.msra.mxu0 0.0
    %172 = vmatprep.subr.mxu0 0.0
    %173 = vmatpush1.msra.mxu0 0.0
    %174 = vmatprep.subr.mxu0 0.0
    %175 = vmatpush1.msra.mxu0 0.0
    %176 = vmatprep.subr.mxu0 0.0
    %177 = vmatpush1.msra.mxu0 0.0
    %178 = vmatprep.subr.mxu0 0.0
    %179 = vmatpush1.msra.mxu0 0.0
    %180 = vmatprep.subr.mxu0 0.0
    %181 = vmatpush1.msra.mxu0 0.0
    %182 = vmatprep.subr.mxu0 0.0
    %183 = vmatpush1.msra.mxu0 0.0
    %184 = vmatprep.subr.mxu0 0.0
    %185 = vmatpush1.msra.mxu0 0.0
    %186 = vmatprep.subr.mxu0 0.0
    %187 = vmatpush1.msra.mxu0 0.0
    %188 = vmatprep.subr.mxu0 0.0
    %189 = vmatpush1.msra.mxu0 0.0
    %190 = vmatprep.subr.mxu0 0.0
    %191 = vmatpush1.msra.mxu0 0.0
    %192 = vmatprep.subr.mxu0 0.0
    %193 = vmatpush1.msra.mxu0 0.0
    %194 = vmatprep.subr.mxu0 0.0
    %195 = vmatpush1.msra.mxu0 0.0
    %196 = vmatprep.subr.mxu0 0.0
    %197 = vmatpush1.msra.mxu0 0.0
    %198 = vmatprep.subr.mxu0 0.0
    %199 = vmatpush1.msra.mxu0 0.0
    %200 = vmatprep.subr.mxu0 0.0
    %201 = vmatpush1.msra.mxu0 0.0
    %202 = vmatprep.subr.mxu0 0.0
    %203 = vmatpush1.msra.mxu0 0.0
    %204 = vmatprep.subr.mxu0 0.0
    %205 = vmatpush1.msra.mxu0 0.0
    %206 = vmatprep.subr.mxu0 0.0
    %207 = vmatpush1.msra.mxu0 0.0
    %208 = vmatprep.subr.mxu0 0.0
    %209 = vmatpush1.msra.mxu0 0.0
    %210 = vmatprep.subr.mxu0 0.0
    %211 = vmatpush1.msra.mxu0 0.0
    %212 = vmatprep.subr.mxu0 0.0
    %213 = vmatpush1.msra.mxu0 0.0
    %214 = vmatprep.subr.mxu0 0.0
    %215 = vmatpush1.msra.mxu0 0.0
    %216 = vmatprep.subr.mxu0 0.0
    %217 = vmatpush1.msra.mxu0 0.0
    %218 = vmatprep.subr.mxu0 0.0
    %219 = vmatpush1.msra.mxu0 0.0
    %220 = vmatprep.subr.mxu0 0.0
    %221 = vmatpush1.msra.mxu0 0.0
    %222 = vmatprep.subr.mxu0 0.0
    %223 = vmatpush1.msra.mxu0 0.0
    %224 = vmatprep.subr.mxu0 0.0
    %225 = vmatpush1.msra.mxu0 0.0
    %226 = vmatprep.mubr.f32.mxu0 0.0
    %227 = vmatmul.mubr.f32.gmra.mrb[0].mxu0 %v72
    %v228 = vpop.f32.mrb[0].mxu0
    %v229 = vadd.f32 %v161, %v228
    %v230 = vpop.f32.mrb[0].mxu0
    %231 = vmatprep.mubr.f32.mxu0 0.0
    %232 = vmatmul.mubr.f32.gmra.mrb[0].mxu0 %v75
    %v233 = vpop.f32.mrb[0].mxu0
    %v234 = vadd.f32 %v161, %v233
    %v235 = vpop.f32.mrb[0].mxu0
    %236 = vdwg.mxu0
    %v237 = vld [vmem:[#allocation2] sm:$0xff]
    %v238 = vld [vmem:[#allocation2 + $0x8] sm:$0xff]
    %v239 = vsel %vm70, %v237, 0.0
    %240 = vadd.xlane.f32.xlu0 %v239
    %v241 = vpop.xlane.xlu0 %240
    %v242 = vsel %vm70, %v238, 0.0
    %243 = vadd.xlane.f32.xlu0 %v242
    %v244 = vpop.xlane.xlu0 %243
    %v245 = vrcp.pop 32.0
    %v246 = vmul.f32 %v241, %v245
    %v247 = vmul.f32 %v244, %v245
    %v248 = vmul.f32 %v237, %v237
    %v249 = vmul.f32 %v238, %v238
    %v250 = vsel %vm70, %v248, 0.0
    %251 = vadd.xlane.f32.xlu0 %v250
    %v252 = vpop.xlane.xlu0 %251
    %v253 = vsel %vm70, %v249, 0.0
    %254 = vadd.xlane.f32.xlu0 %v253
    %v255 = vpop.xlane.xlu0 %254
    %v256 = vmul.f32 %v252, %v245
    %v257 = vmul.f32 %v255, %v245
    %v258 = vsub.f32 %v237, %v246
    %v259 = vsub.f32 %v238, %v247
    %v260 = vmul.f32 %v246, %v246
    %v261 = vmul.f32 %v247, %v247
    %v262 = vsub.f32 %v256, %v260
    %v263 = vsub.f32 %v257, %v261
    %v264 = vadd.f32 %v262, 1e-05
    %v265 = vadd.f32 %v263, 1e-05
    %v266 = vrsqrt.pop %v264
    %v267 = vrsqrt.pop %v265
    %v268 = vmul.f32 %v258, %v266
    %v269 = vmul.f32 %v259, %v267
    %v270 = vld [vmem:[%s3 + $0x2] sm:$0x1]
    %v271 = vlaneseq
    %v272 = vshrl.u32 %v271, 7
    %v273 = vsub.s32 0, %v272
    %v274 = vrot.slane %v270, %v273
    %v275 = vmul.f32 %v268, %v274
    %v276 = vmul.f32 %v269, %v274
    %v277 = vld [vmem:[%s3 + $0x3] sm:$0x1]
    %v278 = vlaneseq
    %v279 = vshrl.u32 %v278, 7
    %v280 = vsub.s32 0, %v279
    %v281 = vrot.slane %v277, %v280
    %v282 = vadd.f32 %v275, %v281
    %v283 = vadd.f32 %v276, %v281
    %v284 = vmul.f32 %v144, %v282
    %v285 = vmul.f32 %v149, %v283
    %v286 = vadd.f32 %v284, %v229
    %v287 = vadd.f32 %v285, %v234
    %288 = vst.msk [vmem:[#allocation8] sm:$0xff] %vm70, %v286
    %289 = vst.msk [vmem:[#allocation8 + $0x8] sm:$0xff] %vm70, %v287
    // Predicated region
    $region30: #{tpu_custom_call.1} parent=1 // pred_check
      _
    $region31: #{tpu_custom_call.1} parent=1 // pred_check_branch
      %291 = sbr.rel (0) target = $region33
    $region32: #{tpu_custom_call.1} parent=1 // pred_region
      %s293 = ssub.s32 256, 256
      %294 = vsyncadd [#allocation4], %s293
      %s295 = sshll.u32 [#allocation8], 4
      %s296 = int_to_ptr.vmem [resolvable:$true] %s295
      %301 = dma.vmem_to_hbm [thread:$0]  %s296, 256, %s4, [#allocation4], 128, 128, 8
    $region33: #{tpu_custom_call.1} parent=1 // pred_fallthru
      _
    // Predicated region
    $region34: #{tpu_custom_call.1} parent=1 // pred_check
      _
    $region35: #{tpu_custom_call.1} parent=1 // pred_check_branch
      %303 = sbr.rel (0) target = $region37
    $region36: #{tpu_custom_call.1} parent=1 // pred_region
      %304 = dma.done [#allocation4], 256
    $region37: #{tpu_custom_call.1} parent=1 // pred_fallthru
      _
    %305 = vsyncpa [#allocation3], 1
    %306 = vsyncpa [#allocation6], 1
    %307 = vsyncpa [#allocation4], 1

</llo_original>
